<compile_context>
chip_gen: v7x
topology: tpu7x:2x2x1
jax: 0.10.0
libtpu: 0.0.40
codegen_flags: <defaults>
</compile_context>

<pallas_src>
import functools
import math

import jax
import jax.numpy as jnp
from jax.experimental import pallas as pl
from jax.experimental.pallas import tpu as pltpu


def _sdpa_kernel(*refs, temperature_inv, has_mask, emit_attn):
    if has_mask:
        q_ref, kt_ref, v_ref, m_ref = refs[:4]
        out_refs = refs[4:]
    else:
        q_ref, kt_ref, v_ref = refs[:3]
        m_ref = None
        out_refs = refs[3:]
    if emit_attn:
        out_ref, attn_ref = out_refs
    else:
        (out_ref,) = out_refs
        attn_ref = None

    q = q_ref[...]          # (block_q, D)
    kt = kt_ref[...]        # (D, Tk)   -- pre-transposed in the wrapper
    v = v_ref[...]          # (Tk, Dv)

    # Pre-scale q (block_q*D elements) instead of the (block_q, Tk) scores.
    qs = q * jnp.asarray(temperature_inv, dtype=q.dtype)

    # scores = (q / temperature) @ k^T  -- MXU, f32 accumulation.
    s = jnp.dot(qs, kt, preferred_element_type=jnp.float32)

    if has_mask:
        # masked_fill(mask, -inf); mask block is (block_q, Tk) or (1, Tk).
        s = jnp.where(m_ref[...] != 0, -jnp.inf, s)

    # Numerically stable row softmax.
    s_max = jnp.max(s, axis=-1, keepdims=True)
    p = jnp.exp(s - s_max)
    denom = jnp.sum(p, axis=-1, keepdims=True)
    # One reciprocal per row + broadcast multiply instead of a (block_q, Tk)
    # divide.  Exact (approx=False) to stay bit-close to the reference.
    inv = pl.reciprocal(denom, approx=False)

    # TODO(synk): attn_dropout (p=0.1) is identity in eval mode; stochastic
    # training-mode dropout is intentionally not implemented here.

    if emit_attn:
        attn = p * inv
        attn_ref[...] = attn.astype(attn_ref.dtype)
        o = jnp.dot(attn.astype(v.dtype), v, preferred_element_type=jnp.float32)
    else:
        # Cheaper: normalise the (block_q, Dv) PV result, not (block_q, Tk) probs.
        o = jnp.dot(p.astype(v.dtype), v, preferred_element_type=jnp.float32)
        o = o * inv
    out_ref[...] = o.astype(out_ref.dtype)


def _pick_block_q(tq):
    # Cap at 256 (v7x VMEM headroom); prefer an exact divisor so blocks stay
    # full; otherwise rely on Pallas partial-last-block handling via cdiv.
    if tq <= 256:
        return tq
    for bq in (256, 128, 64, 32):
        if tq % bq == 0:
            return bq
    return 256


def scaled_dot_product_attention(q, k, v, temperature, mask=None, *,
                                 block_q=None, return_attn=True):
    """Returns (output, attn) matching the PyTorch module in eval mode.

    `mask` may be (B, Tq, Tk) (per-query mask) or (B, 1, Tk) (key-padding
    mask, broadcast in-kernel).  With return_attn=False the attention matrix
    is never materialised to HBM and None is returned in its place.
    """
    B, Tq, D = q.shape
    Bk, Tk, Dk = k.shape
    Bv, Tkv, Dv = v.shape
    assert (B, D) == (Bk, Dk) and (B, Tk) == (Bv, Tkv), "shape mismatch"

    dtype = q.dtype
    has_mask = mask is not None

    if block_q is None:
        block_q = _pick_block_q(Tq)
    block_q = max(1, min(int(block_q), Tq))
    grid = (B, pl.cdiv(Tq, block_q))

    # Hoist the K transpose out of the kernel: K is resident across the whole
    # inner grid axis, so transpose once in XLA instead of once per grid step.
    k_t = jnp.swapaxes(k, 1, 2)  # (B, D, Tk)

    q_spec = pl.BlockSpec((None, block_q, D), lambda b, i: (b, i, 0))
    kt_spec = pl.BlockSpec((None, D, Tk), lambda b, i: (b, 0, 0))
    v_spec = pl.BlockSpec((None, Tk, Dv), lambda b, i: (b, 0, 0))
    out_spec = pl.BlockSpec((None, block_q, Dv), lambda b, i: (b, i, 0))

    in_specs = [q_spec, kt_spec, v_spec]
    args = [q, k_t, v]

    mask_bytes = 0
    if has_mask:
        assert mask.shape[0] == B and mask.shape[2] == Tk
        broadcast_mask = mask.shape[1] == 1
        # int8 mask = 4x less HBM read than int32; fall back to int32 only if
        # the chosen block_q can't satisfy int8 sublane tiling.
        i8_ok = broadcast_mask or block_q == Tq or block_q % 32 == 0
        mask_dtype = jnp.int8 if i8_ok else jnp.int32
        if broadcast_mask:
            m_spec = pl.BlockSpec((None, 1, Tk), lambda b, i: (b, 0, 0))
            mask_bytes = Tk * jnp.dtype(mask_dtype).itemsize
        else:
            assert mask.shape[1] == Tq, "mask must be (B, Tq, Tk) or (B, 1, Tk)"
            m_spec = pl.BlockSpec((None, block_q, Tk), lambda b, i: (b, i, 0))
            mask_bytes = block_q * Tk * jnp.dtype(mask_dtype).itemsize
        in_specs.append(m_spec)
        args.append(mask.astype(mask_dtype))

    out_shapes = [jax.ShapeDtypeStruct((B, Tq, Dv), dtype)]
    out_specs = [out_spec]
    if return_attn:
        out_shapes.append(jax.ShapeDtypeStruct((B, Tq, Tk), dtype))
        out_specs.append(pl.BlockSpec((None, block_q, Tk), lambda b, i: (b, i, 0)))

    # Explicit scoped-VMEM budget: double-buffered blocks + f32 intermediates,
    # clamped below v7x's 64 MiB physical VMEM (and above v5e's 16 MiB default).
    isz = jnp.dtype(dtype).itemsize
    live = 2 * (block_q * D + D * Tk + Tk * Dv + block_q * Dv) * isz
    live += 2 * mask_bytes
    if return_attn:
        live += 2 * block_q * Tk * isz
    live += 4 * block_q * Tk * 4  # f32 score/prob intermediates + slack
    vmem_limit = int(min(max(2 * live, 32 << 20), 56 << 20))

    kernel = functools.partial(
        _sdpa_kernel,
        temperature_inv=float(1.0 / float(temperature)),
        has_mask=has_mask,
        emit_attn=return_attn,
    )

    results = pl.pallas_call(
        kernel,
        out_shape=tuple(out_shapes),
        grid_spec=pltpu.PrefetchScalarGridSpec(
            num_scalar_prefetch=0,
            grid=grid,
            in_specs=in_specs,
            out_specs=out_specs,
        ),
        compiler_params=pltpu.CompilerParams(
            dimension_semantics=("parallel", "parallel"),
            vmem_limit_bytes=vmem_limit,
        ),
    )(*args)

    if return_attn:
        out, attn = results
        return out, attn
    out = results[0] if isinstance(results, (list, tuple)) else results
    return out, None


def scaled_dot_product_attention_ref(q, k, v, temperature, mask=None):
    """Pure-JAX reference mirroring the PyTorch forward (eval mode)."""
    scores = jnp.einsum("btd,bsd->bts", q, k) / temperature
    if mask is not None:
        scores = jnp.where(mask, -jnp.inf, scores)
    attn = jax.nn.softmax(scores, axis=-1)
    out = jnp.einsum("bts,bsd->btd", attn, v)
    return out, attn


if __name__ == "__main__":
    key = jax.random.PRNGKey(0)
    kq, kk, kv, km = jax.random.split(key, 4)

    B, Tq, Tk, D, Dv = 2, 8, 8, 32, 32
    temperature = math.sqrt(D)

    q = jax.random.normal(kq, (B, Tq, D), dtype=jnp.float32)
    k = jax.random.normal(kk, (B, Tk, D), dtype=jnp.float32)
    v = jax.random.normal(kv, (B, Tk, Dv), dtype=jnp.float32)

    # --- no-mask path ---
    out, attn = scaled_dot_product_attention(q, k, v, temperature)
    out = jax.block_until_ready(out)
    attn = jax.block_until_ready(attn)
    out_ref, attn_ref = scaled_dot_product_attention_ref(q, k, v, temperature)
    assert out.shape == (B, Tq, Dv) and attn.shape == (B, Tq, Tk)
    assert out.dtype == q.dtype and attn.dtype == q.dtype
    assert jnp.allclose(out, out_ref, atol=1e-5, rtol=1e-5), "output mismatch"
    assert jnp.allclose(attn, attn_ref, atol=1e-5, rtol=1e-5), "attn mismatch"

    # --- output-only path (attn never written to HBM) ---
    out_only, attn_none = scaled_dot_product_attention(
        q, k, v, temperature, return_attn=False)
    out_only = jax.block_until_ready(out_only)
    assert attn_none is None
    assert jnp.allclose(out_only, out_ref, atol=1e-5, rtol=1e-5), "no-attn output mismatch"

    # --- masked path, full (B, Tq, Tk) mask (>=1 unmasked key per row) ---
    mask = jax.random.bernoulli(km, p=0.3, shape=(B, Tq, Tk))
    mask = mask.at[:, :, 0].set(False)
    out_m, attn_m = scaled_dot_product_attention(q, k, v, temperature, mask=mask)
    out_m = jax.block_until_ready(out_m)
    attn_m = jax.block_until_ready(attn_m)
    out_mr, attn_mr = scaled_dot_product_attention_ref(q, k, v, temperature, mask=mask)
    assert jnp.allclose(out_m, out_mr, atol=1e-5, rtol=1e-5), "masked output mismatch"
    assert jnp.allclose(attn_m, attn_mr, atol=1e-5, rtol=1e-5), "masked attn mismatch"

    # --- masked path, broadcast (B, 1, Tk) key-padding mask ---
    kpad = jnp.zeros((B, 1, Tk), dtype=bool).at[:, :, Tk - 2:].set(True)
    out_p, attn_p = scaled_dot_product_attention(q, k, v, temperature, mask=kpad)
    out_p = jax.block_until_ready(out_p)
    attn_p = jax.block_until_ready(attn_p)
    out_pr, attn_pr = scaled_dot_product_attention_ref(q, k, v, temperature, mask=kpad)
    assert jnp.allclose(out_p, out_pr, atol=1e-5, rtol=1e-5), "kpad output mismatch"
    assert jnp.allclose(attn_p, attn_pr, atol=1e-5, rtol=1e-5), "kpad attn mismatch"

    # --- multi-block query axis (grid > 1 along Tq) ---
    q2 = jax.random.normal(jax.random.PRNGKey(1), (B, 16, D), dtype=jnp.float32)
    out2, attn2 = scaled_dot_product_attention(q2, k, v, temperature, block_q=8)
    out2 = jax.block_until_ready(out2)
    attn2 = jax.block_until_ready(attn2)
    out2_ref, attn2_ref = scaled_dot_product_attention_ref(q2, k, v, temperature)
    assert jnp.allclose(out2, out2_ref, atol=1e-5, rtol=1e-5), "multi-block output mismatch"
    assert jnp.allclose(attn2, attn2_ref, atol=1e-5, rtol=1e-5), "multi-block attn mismatch"

    print("KERNEL_OK")
</pallas_src>

<mosaic_0001>
module attributes {stable_mosaic.version = 11 : i64} {
  func.func @_sdpa_kernel(%arg0: i32, %arg1: i32, %arg2: memref<1x8x32xf32, #tpu.memory_space<vmem>>, %arg3: memref<1x32x8xf32, #tpu.memory_space<vmem>>, %arg4: memref<1x8x32xf32, #tpu.memory_space<vmem>>, %arg5: memref<1x8x32xf32, #tpu.memory_space<vmem>>, %arg6: memref<1x8x8xf32, #tpu.memory_space<vmem>>) attributes {dimension_semantics = [#tpu.dimension_semantics<parallel>, #tpu.dimension_semantics<parallel>], iteration_bounds = array<i64: 2, 1>, scalar_prefetch = 0 : i64, scratch_operands = 0 : i64, tpu.core_type = #tpu.core_type<tc>, window_params = [{transform_indices = @transform_0, window_bounds = array<i64: 1, 8, 32>}, {transform_indices = @transform_1, window_bounds = array<i64: 1, 32, 8>}, {transform_indices = @transform_2, window_bounds = array<i64: 1, 8, 32>}, {transform_indices = @transform_3, window_bounds = array<i64: 1, 8, 32>}, {transform_indices = @transform_4, window_bounds = array<i64: 1, 8, 8>}]} {
    %c0 = arith.constant 0 : index
    %c0_0 = arith.constant 0 : index
    %c0_1 = arith.constant 0 : index
    %0 = vector.load %arg2[%c0, %c0_0, %c0_1] : memref<1x8x32xf32, #tpu.memory_space<vmem>>, vector<1x8x32xf32>
    %1 = vector.shape_cast %0 : vector<1x8x32xf32> to vector<8x32xf32>
    %c0_2 = arith.constant 0 : index
    %c0_3 = arith.constant 0 : index
    %c0_4 = arith.constant 0 : index
    %2 = vector.load %arg3[%c0_2, %c0_3, %c0_4] : memref<1x32x8xf32, #tpu.memory_space<vmem>>, vector<1x32x8xf32>
    %3 = vector.shape_cast %2 : vector<1x32x8xf32> to vector<32x8xf32>
    %c0_5 = arith.constant 0 : index
    %c0_6 = arith.constant 0 : index
    %c0_7 = arith.constant 0 : index
    %4 = vector.load %arg4[%c0_5, %c0_6, %c0_7] : memref<1x8x32xf32, #tpu.memory_space<vmem>>, vector<1x8x32xf32>
    %5 = vector.shape_cast %4 : vector<1x8x32xf32> to vector<8x32xf32>
    %cst = arith.constant 0.176776692 : f32
    %6 = vector.broadcast %cst : f32 to vector<8x32xf32>
    %7 = arith.mulf %1, %6 : vector<8x32xf32>
    %cst_8 = arith.constant dense<0.000000e+00> : vector<8x8xf32>
    %8 = tpu.matmul %7, %3, %cst_8 {dimension_numbers = #tpu.dot_dimension_numbers<[1], [0], [0], [1], [0, 0, 1, 1], [], []>} : vector<8x32xf32>, vector<32x8xf32>, vector<8x8xf32> -> vector<8x8xf32>
    %cst_9 = arith.constant dense<0xFF800000> : vector<8xf32>
    %9 = vector.multi_reduction <maximumf>, %8, %cst_9 [1] : vector<8x8xf32> to vector<8xf32>
    %10 = vector.shape_cast %9 : vector<8xf32> to vector<8x1xf32>
    %11 = vector.broadcast %10 : vector<8x1xf32> to vector<8x8xf32>
    %12 = arith.subf %8, %11 : vector<8x8xf32>
    %13 = math.exp %12 : vector<8x8xf32>
    %cst_10 = arith.constant dense<0.000000e+00> : vector<8xf32>
    %14 = vector.multi_reduction <add>, %13, %cst_10 [1] : vector<8x8xf32> to vector<8xf32>
    %15 = vector.shape_cast %14 : vector<8xf32> to vector<8x1xf32>
    %16 = tpu.reciprocal %15 : vector<8x1xf32> -> vector<8x1xf32>
    %17 = vector.broadcast %16 : vector<8x1xf32> to vector<8x8xf32>
    %18 = arith.mulf %13, %17 : vector<8x8xf32>
    %c0_11 = arith.constant 0 : index
    %c0_12 = arith.constant 0 : index
    %c0_13 = arith.constant 0 : index
    %19 = vector.load %arg6[%c0_11, %c0_12, %c0_13] : memref<1x8x8xf32, #tpu.memory_space<vmem>>, vector<1x8x8xf32>
    %20 = vector.shape_cast %19 : vector<1x8x8xf32> to vector<8x8xf32>
    %21 = vector.shape_cast %18 : vector<8x8xf32> to vector<1x8x8xf32>
    tpu.vector_store %arg6[%c0_11, %c0_12, %c0_13], %21 {strides = array<i32>} : memref<1x8x8xf32, #tpu.memory_space<vmem>>, vector<1x8x8xf32>,
    %cst_14 = arith.constant dense<0.000000e+00> : vector<8x32xf32>
    %22 = tpu.matmul %18, %5, %cst_14 {dimension_numbers = #tpu.dot_dimension_numbers<[1], [0], [0], [1], [0, 0, 1, 1], [], []>} : vector<8x8xf32>, vector<8x32xf32>, vector<8x32xf32> -> vector<8x32xf32>
    %c0_15 = arith.constant 0 : index
    %c0_16 = arith.constant 0 : index
    %c0_17 = arith.constant 0 : index
    %23 = vector.load %arg5[%c0_15, %c0_16, %c0_17] : memref<1x8x32xf32, #tpu.memory_space<vmem>>, vector<1x8x32xf32>
    %24 = vector.shape_cast %23 : vector<1x8x32xf32> to vector<8x32xf32>
    %25 = vector.shape_cast %22 : vector<8x32xf32> to vector<1x8x32xf32>
    tpu.vector_store %arg5[%c0_15, %c0_16, %c0_17], %25 {strides = array<i32>} : memref<1x8x32xf32, #tpu.memory_space<vmem>>, vector<1x8x32xf32>,
    return
  }
  func.func @transform_0(%arg0: i32, %arg1: i32) -> (i32, i32, i32) {
    %c0_i32 = arith.constant 0 : i32
    %c0_i32_0 = arith.constant 0 : i32
    return %arg0, %arg1, %c0_i32 : i32, i32, i32
  }
  func.func @transform_1(%arg0: i32, %arg1: i32) -> (i32, i32, i32) {
    %c0_i32 = arith.constant 0 : i32
    %c0_i32_0 = arith.constant 0 : i32
    %c0_i32_1 = arith.constant 0 : i32
    return %arg0, %c0_i32, %c0_i32_0 : i32, i32, i32
  }
  func.func @transform_2(%arg0: i32, %arg1: i32) -> (i32, i32, i32) {
    %c0_i32 = arith.constant 0 : i32
    %c0_i32_0 = arith.constant 0 : i32
    %c0_i32_1 = arith.constant 0 : i32
    return %arg0, %c0_i32, %c0_i32_0 : i32, i32, i32
  }
  func.func @transform_3(%arg0: i32, %arg1: i32) -> (i32, i32, i32) {
    %c0_i32 = arith.constant 0 : i32
    %c0_i32_0 = arith.constant 0 : i32
    return %arg0, %arg1, %c0_i32 : i32, i32, i32
  }
  func.func @transform_4(%arg0: i32, %arg1: i32) -> (i32, i32, i32) {
    %c0_i32 = arith.constant 0 : i32
    %c0_i32_0 = arith.constant 0 : i32
    return %arg0, %arg1, %c0_i32 : i32, i32, i32
  }
}

</mosaic_0001>

<llo_original>
// kernel: tpu_custom_call.1
$region0: #{tpu_custom_call.1}
  #allocation0 [shape = 'u32[]', space=smem, size = 0x4, offset = 0x4, fixed_abs, tag = 'smem constant byte address 0x4 - core index']
  #allocation1 [shape = 'u32[144,128]{1,0:T(1,128)}', space=vmem, size = 0x12000, scoped, tag = 'internal scratch']
  %s0 = inlined_call_operand.vmem [shape: f32[2,8,32], index: 0, kind: input, shape index: {}]
  %s1 = inlined_call_operand.vmem [shape: f32[2,32,8], index: 1, kind: input, shape index: {}]
  %s2 = inlined_call_operand.vmem [shape: f32[2,8,32], index: 2, kind: input, shape index: {}]
  %s3 = inlined_call_operand.hbm [shape: f32[2,8,32], index: 3, kind: output, shape index: {0}]
  %s4 = inlined_call_operand.hbm [shape: f32[2,8,8], index: 4, kind: output, shape index: {1}]
  %5 = xla_tuple %s3, %s4
  %s6 = sld [smem:[#allocation0]]
  $region53: #{tpu_custom_call.1} parent=0
    _
  %s8 = ssub.s32 1, %s6
  %s9 = scalar_select 0, %s8, %s6
  $region1: #{tpu_custom_call.1} parent=0
    #allocation2 [shape = 'u8[8192]{0}', space=vmem, size = 0x2000, scoped, tag = 'output window, operand 0']
    #allocation3 [shape = 's32[2]{0}', space=sflag, size = 0x8, scoped, tag = 'scoped memory for tpu_custom_call.1']
    #allocation4 [shape = 'u8[8192]{0}', space=vmem, size = 0x2000, scoped, tag = 'output window, operand 1']
    #allocation5 [shape = 's32[2]{0}', space=sflag, size = 0x8, scoped, tag = 'scoped memory for tpu_custom_call.1']
    %10 = vsyncpa [#allocation3], 0
    %s11 = scalar_lea.sflag [#allocation3], 1
    %12 = vsyncpa %s11, 0
    %13 = vsyncpa [#allocation5], 0
    %s14 = scalar_lea.sflag [#allocation5], 1
    %15 = vsyncpa %s14, 0
    loop: start=0, step=1, limit=4
    $region2: #{tpu_custom_call.1} parent=1 // loop_pre_header
      _
    $region3: #{tpu_custom_call.1} parent=1 // loop_header
      %s17 = sphi 0, %s21
      %p18 = scmp.ge.s32.totalorder %s17, 4
      %s24 = sphi 0, %s36
      %s25 = sphi 0, %s32
      %s26 = sphi 0, %s24
      %s27 = sphi 0, %s25
      %s28 = sphi 0, %s26
      %s29 = sphi 0, %s27
      %s41 = sphi 0, %s43
      %s44 = sphi 0, %s41
      %s45 = sphi 0, %s44
      %s61 = sphi 0, %s45
      %s67 = sphi 0, %s69
      %s70 = sphi 0, %s67
      %s71 = sphi 0, %s70
      %s87 = sphi 0, %s71
      %s93 = sphi 0, %s95
      %s96 = sphi 0, %s93
      %s97 = sphi 0, %s96
      %s113 = sphi 0, %s97
      %s121 = sphi 0, %s123
      %s124 = sphi 0, %s121
      %s125 = sphi 0, %s124
      %s141 = sphi 0, %s125
      %s149 = sphi 0, %s151
      %s152 = sphi 0, %s149
      %s153 = sphi 0, %s152
      %s169 = sphi 0, %s153
    $region4: #{tpu_custom_call.1} parent=1 // loop_header_branch
      %20 = sbr.rel (%p18) target = $region8
    $region5: #{tpu_custom_call.1} parent=1 // loop_body
      %s22 = ssub.s32 %s17, 1
      %s23 = ssub.s32 %s17, 2
      %s30 = sadd.s32 1, %s25
      %p31 = scmp.ge.s32.totalorder %s30, 1
      %s32 = scalar_select %p31, 0, %s30
      %s33 = sadd.s32 1, %s24
      %s34 = scalar_select %p31, %s33, %s24
      %p35 = scmp.ge.s32.totalorder %s34, 2
      %s36 = scalar_select %p35, 0, %s34
      %s37 = ssub.s32 %s24, %s36
      %s38 = ssub.s32 %s25, %s32
      %s39 = sor.u32 %s37, %s38
      %p40 = scmp.eq.s32.totalorder %s39, 0
      %s42 = sadd.s32 %s41, 1
      %s43 = scalar_select %p40, %s41, %s42
      %p46 = pneg %p40
      %p47 = scmp.eq.s32.totalorder %s17, 1
      %p48 = por %p46, %p47
      %p49 = scmp.ne.s32.totalorder %s41, %s44
      %p50 = scmp.eq.s32.totalorder %s17, 0
      %p51 = por %p49, %p50
      %p52 = scmp.ne.s32.totalorder %s41, %s44
      %p53 = scmp.eq.s32.totalorder %s22, 1
      %p54 = por %p52, %p53
      %p55 = scmp.ne.s32.totalorder %s44, %s45
      %p56 = scmp.eq.s32.totalorder %s22, 0
      %p57 = por %p55, %p56
      %p58 = scmp.ne.s32.totalorder %s44, %s45
      %p59 = scmp.eq.s32.totalorder %s23, 1
      %p60 = por %p58, %p59
      %p62 = scmp.ne.s32.totalorder %s45, %s61
      %p63 = scmp.eq.s32.totalorder %s23, 0
      %p64 = por %p62, %p63
      %s65 = ssub.s32 %s24, %s36
      %p66 = scmp.eq.s32.totalorder %s65, 0
      %s68 = sadd.s32 %s67, 1
      %s69 = scalar_select %p66, %s67, %s68
      %p72 = pneg %p66
      %p73 = scmp.eq.s32.totalorder %s17, 1
      %p74 = por %p72, %p73
      %p75 = scmp.ne.s32.totalorder %s67, %s70
      %p76 = scmp.eq.s32.totalorder %s17, 0
      %p77 = por %p75, %p76
      %p78 = scmp.ne.s32.totalorder %s67, %s70
      %p79 = scmp.eq.s32.totalorder %s22, 1
      %p80 = por %p78, %p79
      %p81 = scmp.ne.s32.totalorder %s70, %s71
      %p82 = scmp.eq.s32.totalorder %s22, 0
      %p83 = por %p81, %p82
      %p84 = scmp.ne.s32.totalorder %s70, %s71
      %p85 = scmp.eq.s32.totalorder %s23, 1
      %p86 = por %p84, %p85
      %p88 = scmp.ne.s32.totalorder %s71, %s87
      %p89 = scmp.eq.s32.totalorder %s23, 0
      %p90 = por %p88, %p89
      %s91 = ssub.s32 %s24, %s36
      %p92 = scmp.eq.s32.totalorder %s91, 0
      %s94 = sadd.s32 %s93, 1
      %s95 = scalar_select %p92, %s93, %s94
      %p98 = pneg %p92
      %p99 = scmp.eq.s32.totalorder %s17, 1
      %p100 = por %p98, %p99
      %p101 = scmp.ne.s32.totalorder %s93, %s96
      %p102 = scmp.eq.s32.totalorder %s17, 0
      %p103 = por %p101, %p102
      %p104 = scmp.ne.s32.totalorder %s93, %s96
      %p105 = scmp.eq.s32.totalorder %s22, 1
      %p106 = por %p104, %p105
      %p107 = scmp.ne.s32.totalorder %s96, %s97
      %p108 = scmp.eq.s32.totalorder %s22, 0
      %p109 = por %p107, %p108
      %p110 = scmp.ne.s32.totalorder %s96, %s97
      %p111 = scmp.eq.s32.totalorder %s23, 1
      %p112 = por %p110, %p111
      %p114 = scmp.ne.s32.totalorder %s97, %s113
      %p115 = scmp.eq.s32.totalorder %s23, 0
      %p116 = por %p114, %p115
      %s117 = ssub.s32 %s24, %s36
      %s118 = ssub.s32 %s25, %s32
      %s119 = sor.u32 %s117, %s118
      %p120 = scmp.eq.s32.totalorder %s119, 0
      %s122 = sadd.s32 %s121, 1
      %s123 = scalar_select %p120, %s121, %s122
      %p126 = pneg %p120
      %p127 = scmp.eq.s32.totalorder %s17, 1
      %p128 = por %p126, %p127
      %p129 = scmp.ne.s32.totalorder %s121, %s124
      %p130 = scmp.eq.s32.totalorder %s17, 0
      %p131 = por %p129, %p130
      %p132 = scmp.ne.s32.totalorder %s121, %s124
      %p133 = scmp.eq.s32.totalorder %s22, 1
      %p134 = por %p132, %p133
      %p135 = scmp.ne.s32.totalorder %s124, %s125
      %p136 = scmp.eq.s32.totalorder %s22, 0
      %p137 = por %p135, %p136
      %p138 = scmp.ne.s32.totalorder %s124, %s125
      %p139 = scmp.eq.s32.totalorder %s23, 1
      %p140 = por %p138, %p139
      %p142 = scmp.ne.s32.totalorder %s125, %s141
      %p143 = scmp.eq.s32.totalorder %s23, 0
      %p144 = por %p142, %p143
      %s145 = ssub.s32 %s24, %s36
      %s146 = ssub.s32 %s25, %s32
      %s147 = sor.u32 %s145, %s146
      %p148 = scmp.eq.s32.totalorder %s147, 0
      %s150 = sadd.s32 %s149, 1
      %s151 = scalar_select %p148, %s149, %s150
      %p154 = pneg %p148
      %p155 = scmp.eq.s32.totalorder %s17, 1
      %p156 = por %p154, %p155
      %p157 = scmp.ne.s32.totalorder %s149, %s152
      %p158 = scmp.eq.s32.totalorder %s17, 0
      %p159 = por %p157, %p158
      %p160 = scmp.ne.s32.totalorder %s149, %s152
      %p161 = scmp.eq.s32.totalorder %s22, 1
      %p162 = por %p160, %p161
      %p163 = scmp.ne.s32.totalorder %s152, %s153
      %p164 = scmp.eq.s32.totalorder %s22, 0
      %p165 = por %p163, %p164
      %p166 = scmp.ne.s32.totalorder %s152, %s153
      %p167 = scmp.eq.s32.totalorder %s23, 1
      %p168 = por %p166, %p167
      %p170 = scmp.ne.s32.totalorder %s153, %s169
      %p171 = scmp.eq.s32.totalorder %s23, 0
      %p172 = por %p170, %p171
      %p173 = scmp.le.s32.totalorder 1, %s17
      %p174 = scmp.lt.s32.totalorder %s17, 3
      %p175 = pnand %p173, %p174
      %p176 = pneg %p175
      // Predicated region
      $region9: #{tpu_custom_call.1} parent=5 // pred_check
        _
      $region10: #{tpu_custom_call.1} parent=5 // pred_check_branch
        %178 = sbr.rel (%p175) target = $region12
      $region11: #{tpu_custom_call.1} parent=5 // pred_region
        %s179 = ssub.s32 %s17, 1
      $region12: #{tpu_custom_call.1} parent=5 // pred_fallthru
        _
      %p180 = scmp.lt.s32.totalorder %s17, 2
      // Predicated region
      $region13: #{tpu_custom_call.1} parent=5 // pred_check
        %p181 = pneg %p180
      $region14: #{tpu_custom_call.1} parent=5 // pred_check_branch
        %183 = sbr.rel (%p181) target = $region16
      $region15: #{tpu_custom_call.1} parent=5 // pred_region
        // Predicated region
        $region17: #{tpu_custom_call.1} parent=15 // pred_check
          %p184 = pneg %p51
        $region18: #{tpu_custom_call.1} parent=15 // pred_check_branch
          %186 = sbr.rel (%p184) target = $region20
        $region19: #{tpu_custom_call.1} parent=15 // pred_region
          %p187 = scmp.lt.s32.totalorder %s24, 1
          %s188 = scalar_select %p187, %s24, 1
          %p189 = scmp.lt.s32.totalorder %s25, 0
          %s190 = scalar_select %p189, %s25, 0
          %s191 = sadd.s32 %s190, %s188
          %s192 = smul.addr %s191, 8
          %s193 = scalar_lea.vmem %s0, %s192
        $region20: #{tpu_custom_call.1} parent=15 // pred_fallthru
          _
        // Predicated region
        $region21: #{tpu_custom_call.1} parent=15 // pred_check
          %p194 = pneg %p77
        $region22: #{tpu_custom_call.1} parent=15 // pred_check_branch
          %196 = sbr.rel (%p194) target = $region24
        $region23: #{tpu_custom_call.1} parent=15 // pred_region
          %p197 = scmp.lt.s32.totalorder %s24, 1
          %s198 = scalar_select %p197, %s24, 1
          %s199 = smul.addr %s198, 4
          %s200 = smul.addr %s199, 8
          %s201 = scalar_lea.vmem %s1, %s200
        $region24: #{tpu_custom_call.1} parent=15 // pred_fallthru
          _
        // Predicated region
        $region25: #{tpu_custom_call.1} parent=15 // pred_check
          %p202 = pneg %p103
        $region26: #{tpu_custom_call.1} parent=15 // pred_check_branch
          %204 = sbr.rel (%p202) target = $region28
        $region27: #{tpu_custom_call.1} parent=15 // pred_region
          %p205 = scmp.lt.s32.totalorder %s24, 1
          %s206 = scalar_select %p205, %s24, 1
          %s207 = smul.addr %s206, 8
          %s208 = scalar_lea.vmem %s2, %s207
        $region28: #{tpu_custom_call.1} parent=15 // pred_fallthru
          _
      $region16: #{tpu_custom_call.1} parent=5 // pred_fallthru
        _
      %p209 = scmp.le.s32.totalorder 1, %s17
      %p210 = scmp.lt.s32.totalorder %s17, 3
      %p211 = pnand %p209, %p210
      %p212 = pneg %p211
      // Predicated region
      $region29: #{tpu_custom_call.1} parent=5 // pred_check
        _
      $region30: #{tpu_custom_call.1} parent=5 // pred_check_branch
        %214 = sbr.rel (%p211) target = $region32
      $region31: #{tpu_custom_call.1} parent=5 // pred_region
        %s215 = ssub.s32 %s17, 1
        %p216 = scmp.lt.s32.totalorder %s26, 1
        %s217 = scalar_select %p216, %s26, 1
        %p218 = scmp.lt.s32.totalorder %s27, 0
        %s219 = scalar_select %p218, %s27, 0
        %s220 = sadd.s32 %s219, %s217
        %s221 = smul.addr %s220, 8
        %s222 = scalar_lea.vmem %s0, %s221
        %p223 = pneg %p57
        %p224 = pneg %p54
        %p225 = scmp.lt.s32.totalorder %s26, 1
        %s226 = scalar_select %p225, %s26, 1
        %s227 = smul.addr %s226, 4
        %s228 = smul.addr %s227, 8
        %s229 = scalar_lea.vmem %s1, %s228
        %p230 = pneg %p83
        %p231 = pneg %p80
        %p232 = scmp.lt.s32.totalorder %s26, 1
        %s233 = scalar_select %p232, %s26, 1
        %s234 = smul.addr %s233, 8
        %s235 = scalar_lea.vmem %s2, %s234
        %p236 = pneg %p109
        %p237 = pneg %p106
        %p238 = pneg %p137
        %p239 = pneg %p134
        %s240 = sand.u32 %s124, 1
        %s241 = scalar_lea.sflag [#allocation3], %s240
        %s242 = sand.u32 %s124, 1
        %s243 = smul.addr %s242, 8
        %s244 = scalar_lea.vmem [#allocation2], %s243
        %p245 = pneg %p165
        %p246 = pneg %p162
        %s247 = sand.u32 %s152, 1
        %s248 = scalar_lea.sflag [#allocation5], %s247
        %s249 = sand.u32 %s152, 1
        %s250 = smul.addr %s249, 8
        %s251 = scalar_lea.vmem [#allocation4], %s250
        %p252 = scmp.lt.s32.totalorder %s26, 1
        %s253 = scalar_select %p252, %s26, 1
        %p254 = scmp.lt.s32.totalorder %s27, 0
        %s255 = scalar_select %p254, %s27, 0
        %s256 = sadd.s32 %s255, %s253
        %s257 = smul.addr %s256, 8
        %s258 = scalar_lea.vmem %s0, %s257
        %p259 = scmp.lt.s32.totalorder %s26, 1
        %s260 = scalar_select %p259, %s26, 1
        %s261 = smul.addr %s260, 4
        %s262 = smul.addr %s261, 8
        %s263 = scalar_lea.vmem %s1, %s262
        %p264 = scmp.lt.s32.totalorder %s26, 1
        %s265 = scalar_select %p264, %s26, 1
        %s266 = smul.addr %s265, 8
        %s267 = scalar_lea.vmem %s2, %s266
        %v268 = vld [vmem:[%s258] sm:$0xff]
        %v269 = vld [vmem:[%s263] sm:$0xff]
        %v270 = vld [vmem:[%s263 + $0x8] sm:$0xff]
        %v271 = vld [vmem:[%s263 + $0x10] sm:$0xff]
        %v272 = vld [vmem:[%s263 + $0x18] sm:$0xff]
        %v273 = vld [vmem:[%s267] sm:$0xff]
        %v274 = vmul.f32 %v268, 0.17677669
        %vm275 = vcmask 261120
        %v277 = vsel %vm275, %v274, 0
        %279 = vmatprep.subr.mxu0 0.0
        %280 = vmatpush1.msra.mxu0 %v269
        %281 = vmatprep.subr.mxu0 0.0
        %282 = vmatpush1.msra.mxu0 %v270
        %283 = vmatprep.subr.mxu0 0.0
        %284 = vmatpush1.msra.mxu0 %v271
        %285 = vmatprep.subr.mxu0 0.0
        %286 = vmatpush1.msra.mxu0 %v272
        %287 = vmatprep.subr.mxu0 0.0
        %288 = vmatpush1.msra.mxu0 0.0
        %289 = vmatprep.subr.mxu0 0.0
        %290 = vmatpush1.msra.mxu0 0.0
        %291 = vmatprep.subr.mxu0 0.0
        %292 = vmatpush1.msra.mxu0 0.0
        %293 = vmatprep.subr.mxu0 0.0
        %294 = vmatpush1.msra.mxu0 0.0
        %295 = vmatprep.subr.mxu0 0.0
        %296 = vmatpush1.msra.mxu0 0.0
        %297 = vmatprep.subr.mxu0 0.0
        %298 = vmatpush1.msra.mxu0 0.0
        %299 = vmatprep.subr.mxu0 0.0
        %300 = vmatpush1.msra.mxu0 0.0
        %301 = vmatprep.subr.mxu0 0.0
        %302 = vmatpush1.msra.mxu0 0.0
        %303 = vmatprep.subr.mxu0 0.0
        %304 = vmatpush1.msra.mxu0 0.0
        %305 = vmatprep.subr.mxu0 0.0
        %306 = vmatpush1.msra.mxu0 0.0
        %307 = vmatprep.subr.mxu0 0.0
        %308 = vmatpush1.msra.mxu0 0.0
        %309 = vmatprep.subr.mxu0 0.0
        %310 = vmatpush1.msra.mxu0 0.0
        %311 = vmatprep.subr.mxu0 0.0
        %312 = vmatpush1.msra.mxu0 0.0
        %313 = vmatprep.subr.mxu0 0.0
        %314 = vmatpush1.msra.mxu0 0.0
        %315 = vmatprep.subr.mxu0 0.0
        %316 = vmatpush1.msra.mxu0 0.0
        %317 = vmatprep.subr.mxu0 0.0
        %318 = vmatpush1.msra.mxu0 0.0
        %319 = vmatprep.subr.mxu0 0.0
        %320 = vmatpush1.msra.mxu0 0.0
        %321 = vmatprep.subr.mxu0 0.0
        %322 = vmatpush1.msra.mxu0 0.0
        %323 = vmatprep.subr.mxu0 0.0
        %324 = vmatpush1.msra.mxu0 0.0
        %325 = vmatprep.subr.mxu0 0.0
        %326 = vmatpush1.msra.mxu0 0.0
        %327 = vmatprep.subr.mxu0 0.0
        %328 = vmatpush1.msra.mxu0 0.0
        %329 = vmatprep.subr.mxu0 0.0
        %330 = vmatpush1.msra.mxu0 0.0
        %331 = vmatprep.subr.mxu0 0.0
        %332 = vmatpush1.msra.mxu0 0.0
        %333 = vmatprep.subr.mxu0 0.0
        %334 = vmatpush1.msra.mxu0 0.0
        %335 = vmatprep.subr.mxu0 0.0
        %336 = vmatpush1.msra.mxu0 0.0
        %337 = vmatprep.subr.mxu0 0.0
        %338 = vmatpush1.msra.mxu0 0.0
        %339 = vmatprep.subr.mxu0 0.0
        %340 = vmatpush1.msra.mxu0 0.0
        %341 = vmatprep.subr.mxu0 0.0
        %342 = vmatpush1.msra.mxu0 0.0
        %343 = vmatprep.mubr.f32.mxu0 0.0
        %344 = vmatmul.mubr.f32.gmra.mrb[0].mxu0 %v277
        %v345 = vpop.f32.mrb[0].mxu0
        %v346 = vadd.f32 0.0, %v345
        %v347 = vpop.f32.mrb[0].mxu0
        %348 = vdwg.mxu0
        %vm349 = vcmask 64512
        %v350 = vsel %vm349, %v346, -inf
        %351 = vmax.xlane.f32.xlu0 %v350
        %v352 = vpop.xlane.xlu0 %351
        %v353 = vsub.f32 %v346, %v352
        %v354 = vmul.f32 %v353, 1.442695
        %v355 = vpow.pop %v354
        %v356 = vsel %vm349, %v355, 0.0
        %357 = vadd.xlane.f32.xlu0 %v356
        %v358 = vpop.xlane.xlu0 %357
        %v359 = vrcp.pop %v358
        %v360 = vmul.f32 %v355, %v359
        %361 = vst.msk [vmem:[%s251] sm:$0xff] %vm349, %v360
        %v363 = vsel %vm349, %v360, 0
        %365 = vmatprep.subr.mxu0 0.0
        %366 = vmatpush1.msra.mxu0 %v273
        %367 = vmatprep.subr.mxu0 0.0
        %368 = vmatpush1.msra.mxu0 0.0
        %369 = vmatprep.subr.mxu0 0.0
        %370 = vmatpush1.msra.mxu0 0.0
        %371 = vmatprep.subr.mxu0 0.0
        %372 = vmatpush1.msra.mxu0 0.0
        %373 = vmatprep.subr.mxu0 0.0
        %374 = vmatpush1.msra.mxu0 0.0
        %375 = vmatprep.subr.mxu0 0.0
        %376 = vmatpush1.msra.mxu0 0.0
        %377 = vmatprep.subr.mxu0 0.0
        %378 = vmatpush1.msra.mxu0 0.0
        %379 = vmatprep.subr.mxu0 0.0
        %380 = vmatpush1.msra.mxu0 0.0
        %381 = vmatprep.subr.mxu0 0.0
        %382 = vmatpush1.msra.mxu0 0.0
        %383 = vmatprep.subr.mxu0 0.0
        %384 = vmatpush1.msra.mxu0 0.0
        %385 = vmatprep.subr.mxu0 0.0
        %386 = vmatpush1.msra.mxu0 0.0
        %387 = vmatprep.subr.mxu0 0.0
        %388 = vmatpush1.msra.mxu0 0.0
        %389 = vmatprep.subr.mxu0 0.0
        %390 = vmatpush1.msra.mxu0 0.0
        %391 = vmatprep.subr.mxu0 0.0
        %392 = vmatpush1.msra.mxu0 0.0
        %393 = vmatprep.subr.mxu0 0.0
        %394 = vmatpush1.msra.mxu0 0.0
        %395 = vmatprep.subr.mxu0 0.0
        %396 = vmatpush1.msra.mxu0 0.0
        %397 = vmatprep.subr.mxu0 0.0
        %398 = vmatpush1.msra.mxu0 0.0
        %399 = vmatprep.subr.mxu0 0.0
        %400 = vmatpush1.msra.mxu0 0.0
        %401 = vmatprep.subr.mxu0 0.0
        %402 = vmatpush1.msra.mxu0 0.0
        %403 = vmatprep.subr.mxu0 0.0
        %404 = vmatpush1.msra.mxu0 0.0
        %405 = vmatprep.subr.mxu0 0.0
        %406 = vmatpush1.msra.mxu0 0.0
        %407 = vmatprep.subr.mxu0 0.0
        %408 = vmatpush1.msra.mxu0 0.0
        %409 = vmatprep.subr.mxu0 0.0
        %410 = vmatpush1.msra.mxu0 0.0
        %411 = vmatprep.subr.mxu0 0.0
        %412 = vmatpush1.msra.mxu0 0.0
        %413 = vmatprep.subr.mxu0 0.0
        %414 = vmatpush1.msra.mxu0 0.0
        %415 = vmatprep.subr.mxu0 0.0
        %416 = vmatpush1.msra.mxu0 0.0
        %417 = vmatprep.subr.mxu0 0.0
        %418 = vmatpush1.msra.mxu0 0.0
        %419 = vmatprep.subr.mxu0 0.0
        %420 = vmatpush1.msra.mxu0 0.0
        %421 = vmatprep.subr.mxu0 0.0
        %422 = vmatpush1.msra.mxu0 0.0
        %423 = vmatprep.subr.mxu0 0.0
        %424 = vmatpush1.msra.mxu0 0.0
        %425 = vmatprep.subr.mxu0 0.0
        %426 = vmatpush1.msra.mxu0 0.0
        %427 = vmatprep.subr.mxu0 0.0
        %428 = vmatpush1.msra.mxu0 0.0
        %429 = vmatprep.mubr.f32.mxu0 0.0
        %430 = vmatmul.mubr.f32.gmra.mrb[0].mxu0 %v363
        %v431 = vpop.f32.mrb[0].mxu0
        %v432 = vadd.f32 0.0, %v431
        %v433 = vpop.f32.mrb[0].mxu0
        %434 = vdwg.mxu0
        %435 = vst.msk [vmem:[%s244] sm:$0xff] %vm275, %v432
        %s436 = sand.u32 %s124, 1
        %s437 = scalar_lea.sflag [#allocation3], %s436
        %s438 = sand.u32 %s124, 1
        %s439 = smul.addr %s438, 8
        %s440 = scalar_lea.vmem [#allocation2], %s439
        %s441 = sand.u32 %s152, 1
        %s442 = scalar_lea.sflag [#allocation5], %s441
        %s443 = sand.u32 %s152, 1
        %s444 = smul.addr %s443, 8
        %s445 = scalar_lea.vmem [#allocation4], %s444
        // Predicated region
        $region33: #{tpu_custom_call.1} parent=31 // pred_check
          %p446 = pneg %p134
        $region34: #{tpu_custom_call.1} parent=31 // pred_check_branch
          %448 = sbr.rel (%p446) target = $region36
        $region35: #{tpu_custom_call.1} parent=31 // pred_region
          %s450 = ssub.s32 128, 128
          %451 = vsyncadd %s437, %s450
          %s452 = sadd.s32 %s27, %s26
          %s453 = smul.addr %s452, 128
          %s454 = scalar_lea.hbm %s3, %s453
          %s456 = sshll.u32 %s440, 4
          %s457 = int_to_ptr.vmem [resolvable:$true] %s456
          %459 = dma.vmem_to_hbm [thread:$0]  %s457, 128, %s454, %s437
        $region36: #{tpu_custom_call.1} parent=31 // pred_fallthru
          _
        // Predicated region
        $region37: #{tpu_custom_call.1} parent=31 // pred_check
          %p460 = pneg %p162
        $region38: #{tpu_custom_call.1} parent=31 // pred_check_branch
          %462 = sbr.rel (%p460) target = $region40
        $region39: #{tpu_custom_call.1} parent=31 // pred_region
          %s464 = ssub.s32 128, 128
          %465 = vsyncadd %s442, %s464
          %s466 = sadd.s32 %s27, %s26
          %s467 = smul.addr %s466, 128
          %s468 = scalar_lea.hbm %s4, %s467
          %s470 = sshll.u32 %s445, 4
          %s471 = int_to_ptr.vmem [resolvable:$true] %s470
          %473 = dma.vmem_to_hbm [thread:$0]  %s471, 128, %s468, %s442
        $region40: #{tpu_custom_call.1} parent=31 // pred_fallthru
          _
      $region32: #{tpu_custom_call.1} parent=5 // pred_fallthru
        _
      %p474 = scmp.le.s32.totalorder 2, %s17
      // Predicated region
      $region41: #{tpu_custom_call.1} parent=5 // pred_check
        %p475 = pneg %p474
      $region42: #{tpu_custom_call.1} parent=5 // pred_check_branch
        %477 = sbr.rel (%p475) target = $region44
      $region43: #{tpu_custom_call.1} parent=5 // pred_region
        %s478 = ssub.s32 %s17, 2
        // Predicated region
        $region45: #{tpu_custom_call.1} parent=43 // pred_check
          %p479 = pneg %p140
        $region46: #{tpu_custom_call.1} parent=43 // pred_check_branch
          %481 = sbr.rel (%p479) target = $region48
        $region47: #{tpu_custom_call.1} parent=43 // pred_region
          %s482 = sand.u32 %s125, 1
          %s483 = scalar_lea.sflag [#allocation3], %s482
          %s484 = sand.u32 %s125, 1
          %s485 = smul.addr %s484, 8
          %s486 = scalar_lea.vmem [#allocation2], %s485
          %487 = dma.done %s483, 128
        $region48: #{tpu_custom_call.1} parent=43 // pred_fallthru
          _
        // Predicated region
        $region49: #{tpu_custom_call.1} parent=43 // pred_check
          %p488 = pneg %p168
        $region50: #{tpu_custom_call.1} parent=43 // pred_check_branch
          %490 = sbr.rel (%p488) target = $region52
        $region51: #{tpu_custom_call.1} parent=43 // pred_region
          %s491 = sand.u32 %s153, 1
          %s492 = scalar_lea.sflag [#allocation5], %s491
          %s493 = sand.u32 %s153, 1
          %s494 = smul.addr %s493, 8
          %s495 = scalar_lea.vmem [#allocation4], %s494
          %496 = dma.done %s492, 128
        $region52: #{tpu_custom_call.1} parent=43 // pred_fallthru
          _
      $region44: #{tpu_custom_call.1} parent=5 // pred_fallthru
        _
    $region6: #{tpu_custom_call.1} parent=1 // loop_footer
      %s21 = sadd.s32 1, %s17
    $region7: #{tpu_custom_call.1} parent=1 // loop_footer_branch
      %16 = sbr.rel target = $region3
    $region8: #{tpu_custom_call.1} parent=1 // loop_exit
      _
    %497 = vsyncpa [#allocation3], 1
    %s498 = scalar_lea.sflag [#allocation3], 1
    %499 = vsyncpa %s498, 1
    %500 = vsyncpa [#allocation5], 1
    %s501 = scalar_lea.sflag [#allocation5], 1
    %502 = vsyncpa %s501, 1

</llo_original>
